<compile_context>
chip_gen: v6e
topology: v6e:2x2x1
jax: 0.10.0
libtpu: 0.0.40
codegen_flags: <defaults>
</compile_context>

<pallas_src>
import math

import jax
import jax.numpy as jnp
from jax import lax
from jax.experimental import pallas as pl
from jax.experimental.pallas import tpu as pltpu

_LANES = 128


def _make_dense_kernel(n_basis: int, group: int):
    """Kernel over the byte-identical (rows, 128) view of the (M, n_basis) output.

    Each 128-lane output row packs `group = 128 // n_basis` consecutive distances:
      out[r, c] = sin(freq[c % n_basis] * d[r, c // n_basis]) / d[r, c // n_basis]
    """

    def kernel(d_ref, o_ref):
        d = d_ref[...]                      # (tile_r, group) f32 distances
        inv = 1.0 / d                       # hoisted: one exact divide per distance

        lane = lax.broadcasted_iota(jnp.int32, (1, _LANES), 1)
        lane_f = lane.astype(jnp.float32)
        pi = jnp.float32(math.pi)

        # Lane-expand (frequency * d) and 1/d with 0/1 masks: exact, pure VPU work,
        # no reshapes / gathers / integer div-mod needed.
        arg = None
        inv_exp = None
        for i in range(group):
            lo = i * n_basis
            m = ((lane >= lo) & (lane < lo + n_basis)).astype(jnp.float32)  # (1, 128)
            # frequency (j + 1) * pi on this group's lanes, 0 elsewhere
            fm = m * ((lane_f - jnp.float32(lo - 1)) * pi)                  # (1, 128)
            a_i = d[:, i:i + 1] * fm                                        # (tile_r, 128)
            v_i = inv[:, i:i + 1] * m                                       # (tile_r, 128)
            arg = a_i if arg is None else arg + a_i
            inv_exp = v_i if inv_exp is None else inv_exp + v_i

        o_ref[...] = jnp.sin(arg) * inv_exp

    return kernel


def _make_simple_kernel(n_basis: int):
    """Fallback for n_basis that does not divide 128: (tile_m, 1) x (1, n_basis) broadcast."""

    def kernel(d_ref, o_ref):
        d = d_ref[...]                      # (tile_m, 1)
        inv = 1.0 / d
        j = lax.broadcasted_iota(jnp.int32, (1, n_basis), 1)
        freq = (j + 1).astype(jnp.float32) * jnp.float32(math.pi)
        o_ref[...] = jnp.sin(freq * d) * inv

    return kernel


def radial_bessel(dist, n_basis=16, *, tile_rows=1024):
    """dist: (B, n_atoms, n_atoms) float32 -> (B, n_atoms, n_atoms, n_basis)."""
    dist = jnp.asarray(dist, jnp.float32)
    B, A1, A2 = dist.shape
    M = B * A1 * A2
    dist_flat = dist.reshape(M)

    tile_rows = max(8, (int(tile_rows) // 8) * 8)  # keep block rows a multiple of 8

    if _LANES % n_basis == 0:
        # ---- lane-dense path -------------------------------------------------
        group = _LANES // n_basis
        pad = (-M) % group                      # at most group-1 elements
        if pad:
            dist_flat = jnp.concatenate([dist_flat, jnp.ones((pad,), jnp.float32)])
        Mp = M + pad
        R = Mp // group                         # rows of the 128-lane view
        dist2 = dist_flat.reshape(R, group)

        tile_r = min(tile_rows, R)              # multiple of 8, or the full extent
        grid = (pl.cdiv(R, tile_r),)

        out2 = pl.pallas_call(
            _make_dense_kernel(n_basis, group),
            out_shape=jax.ShapeDtypeStruct((R, _LANES), jnp.float32),
            grid_spec=pltpu.PrefetchScalarGridSpec(
                num_scalar_prefetch=0,
                grid=grid,
                in_specs=[pl.BlockSpec((tile_r, group), lambda i: (i, 0))],
                out_specs=pl.BlockSpec((tile_r, _LANES), lambda i: (i, 0)),
            ),
            compiler_params=pltpu.CompilerParams(
                dimension_semantics=("parallel",),
            ),
        )(dist2)

        out_flat = out2.reshape(Mp, n_basis)[:M]
    else:
        # TODO(synk): lane-dense packing assumes 128 % n_basis == 0; generic fallback
        # keeps a (tile_m, n_basis) output block (masked stores, but still large tiles).
        pad = (-M) % 8
        if pad:
            dist_flat = jnp.concatenate([dist_flat, jnp.ones((pad,), jnp.float32)])
        Mp = M + pad
        tile_m = min(8 * tile_rows, Mp)
        grid = (pl.cdiv(Mp, tile_m),)

        out_p = pl.pallas_call(
            _make_simple_kernel(n_basis),
            out_shape=jax.ShapeDtypeStruct((Mp, n_basis), jnp.float32),
            grid_spec=pltpu.PrefetchScalarGridSpec(
                num_scalar_prefetch=0,
                grid=grid,
                in_specs=[pl.BlockSpec((tile_m, 1), lambda i: (i, 0))],
                out_specs=pl.BlockSpec((tile_m, n_basis), lambda i: (i, 0)),
            ),
            compiler_params=pltpu.CompilerParams(
                dimension_semantics=("parallel",),
            ),
        )(dist_flat.reshape(Mp, 1))

        out_flat = out_p[:M]

    return out_flat.reshape(B, A1, A2, n_basis)


if __name__ == "__main__":
    key = jax.random.PRNGKey(0)
    B, n_atoms, n_basis = 2, 8, 16

    # Strictly positive interatomic distances (avoid the 0/0 singularity, as in real usage).
    dist = jax.random.uniform(
        key, (B, n_atoms, n_atoms), jnp.float32, minval=0.5, maxval=5.0
    )

    out = radial_bessel(dist, n_basis=n_basis)
    out = jax.block_until_ready(out)

    # Reference check in plain JAX (same math as the PyTorch forward).
    freqs = jnp.arange(1, n_basis + 1, dtype=jnp.float32) * jnp.pi
    ref = jnp.sin(freqs * dist[..., None]) / dist[..., None]

    assert out.shape == (B, n_atoms, n_atoms, n_basis), out.shape
    assert jnp.allclose(out, ref, atol=1e-5, rtol=1e-5), float(jnp.max(jnp.abs(out - ref)))

    print("KERNEL_OK")
</pallas_src>

<mosaic_0001>
module attributes {stable_mosaic.version = 11 : i64} {
  func.func @kernel(%arg0: i32, %arg1: memref<16x8xf32, #tpu.memory_space<vmem>>, %arg2: memref<16x128xf32, #tpu.memory_space<vmem>>) attributes {dimension_semantics = [#tpu.dimension_semantics<parallel>], iteration_bounds = array<i64: 1>, scalar_prefetch = 0 : i64, scratch_operands = 0 : i64, tpu.core_type = #tpu.core_type<tc>, window_params = [{transform_indices = @transform_0, window_bounds = array<i64: 16, 8>}, {transform_indices = @transform_1, window_bounds = array<i64: 16, 128>}]} {
    %c0 = arith.constant 0 : index
    %c0_0 = arith.constant 0 : index
    %0 = vector.load %arg1[%c0, %c0_0] : memref<16x8xf32, #tpu.memory_space<vmem>>, vector<16x8xf32>
    %cst = arith.constant 1.000000e+00 : f32
    %1 = vector.broadcast %cst : f32 to vector<16x8xf32>
    %2 = arith.divf %1, %0 : vector<16x8xf32>
    %3 = tpu.iota {dimensions = array<i32: 1>} : vector<1x128xi32>
    %4 = arith.sitofp %3 : vector<1x128xi32> to vector<1x128xf32>
    %c0_i32 = arith.constant 0 : i32
    %5 = vector.broadcast %c0_i32 : i32 to vector<1x128xi32>
    %6 = arith.cmpi sge, %3, %5 : vector<1x128xi32>
    %c16_i32 = arith.constant 16 : i32
    %7 = vector.broadcast %c16_i32 : i32 to vector<1x128xi32>
    %8 = arith.cmpi slt, %3, %7 : vector<1x128xi32>
    %9 = arith.andi %6, %8 : vector<1x128xi1>
    %10 = arith.extui %9 : vector<1x128xi1> to vector<1x128xi32>
    %11 = arith.sitofp %10 : vector<1x128xi32> to vector<1x128xf32>
    %cst_1 = arith.constant -1.000000e+00 : f32
    %12 = vector.broadcast %cst_1 : f32 to vector<1x128xf32>
    %13 = arith.subf %4, %12 : vector<1x128xf32>
    %cst_2 = arith.constant 3.14159274 : f32
    %14 = vector.broadcast %cst_2 : f32 to vector<1x128xf32>
    %15 = arith.mulf %13, %14 : vector<1x128xf32>
    %16 = arith.mulf %11, %15 : vector<1x128xf32>
    %17 = vector.extract_strided_slice %0 {offsets = [0, 0], sizes = [16, 1], strides = [1, 1]} : vector<16x8xf32> to vector<16x1xf32>
    %18 = vector.broadcast %17 : vector<16x1xf32> to vector<16x128xf32>
    %19 = vector.broadcast %16 : vector<1x128xf32> to vector<16x128xf32>
    %20 = arith.mulf %18, %19 : vector<16x128xf32>
    %21 = vector.extract_strided_slice %2 {offsets = [0, 0], sizes = [16, 1], strides = [1, 1]} : vector<16x8xf32> to vector<16x1xf32>
    %22 = vector.broadcast %21 : vector<16x1xf32> to vector<16x128xf32>
    %23 = vector.broadcast %11 : vector<1x128xf32> to vector<16x128xf32>
    %24 = arith.mulf %22, %23 : vector<16x128xf32>
    %c16_i32_3 = arith.constant 16 : i32
    %25 = vector.broadcast %c16_i32_3 : i32 to vector<1x128xi32>
    %26 = arith.cmpi sge, %3, %25 : vector<1x128xi32>
    %c32_i32 = arith.constant 32 : i32
    %27 = vector.broadcast %c32_i32 : i32 to vector<1x128xi32>
    %28 = arith.cmpi slt, %3, %27 : vector<1x128xi32>
    %29 = arith.andi %26, %28 : vector<1x128xi1>
    %30 = arith.extui %29 : vector<1x128xi1> to vector<1x128xi32>
    %31 = arith.sitofp %30 : vector<1x128xi32> to vector<1x128xf32>
    %cst_4 = arith.constant 1.500000e+01 : f32
    %32 = vector.broadcast %cst_4 : f32 to vector<1x128xf32>
    %33 = arith.subf %4, %32 : vector<1x128xf32>
    %cst_5 = arith.constant 3.14159274 : f32
    %34 = vector.broadcast %cst_5 : f32 to vector<1x128xf32>
    %35 = arith.mulf %33, %34 : vector<1x128xf32>
    %36 = arith.mulf %31, %35 : vector<1x128xf32>
    %37 = vector.extract_strided_slice %0 {offsets = [0, 1], sizes = [16, 1], strides = [1, 1]} : vector<16x8xf32> to vector<16x1xf32>
    %38 = vector.broadcast %37 : vector<16x1xf32> to vector<16x128xf32>
    %39 = vector.broadcast %36 : vector<1x128xf32> to vector<16x128xf32>
    %40 = arith.mulf %38, %39 : vector<16x128xf32>
    %41 = vector.extract_strided_slice %2 {offsets = [0, 1], sizes = [16, 1], strides = [1, 1]} : vector<16x8xf32> to vector<16x1xf32>
    %42 = vector.broadcast %41 : vector<16x1xf32> to vector<16x128xf32>
    %43 = vector.broadcast %31 : vector<1x128xf32> to vector<16x128xf32>
    %44 = arith.mulf %42, %43 : vector<16x128xf32>
    %45 = arith.addf %20, %40 : vector<16x128xf32>
    %46 = arith.addf %24, %44 : vector<16x128xf32>
    %c32_i32_6 = arith.constant 32 : i32
    %47 = vector.broadcast %c32_i32_6 : i32 to vector<1x128xi32>
    %48 = arith.cmpi sge, %3, %47 : vector<1x128xi32>
    %c48_i32 = arith.constant 48 : i32
    %49 = vector.broadcast %c48_i32 : i32 to vector<1x128xi32>
    %50 = arith.cmpi slt, %3, %49 : vector<1x128xi32>
    %51 = arith.andi %48, %50 : vector<1x128xi1>
    %52 = arith.extui %51 : vector<1x128xi1> to vector<1x128xi32>
    %53 = arith.sitofp %52 : vector<1x128xi32> to vector<1x128xf32>
    %cst_7 = arith.constant 3.100000e+01 : f32
    %54 = vector.broadcast %cst_7 : f32 to vector<1x128xf32>
    %55 = arith.subf %4, %54 : vector<1x128xf32>
    %cst_8 = arith.constant 3.14159274 : f32
    %56 = vector.broadcast %cst_8 : f32 to vector<1x128xf32>
    %57 = arith.mulf %55, %56 : vector<1x128xf32>
    %58 = arith.mulf %53, %57 : vector<1x128xf32>
    %59 = vector.extract_strided_slice %0 {offsets = [0, 2], sizes = [16, 1], strides = [1, 1]} : vector<16x8xf32> to vector<16x1xf32>
    %60 = vector.broadcast %59 : vector<16x1xf32> to vector<16x128xf32>
    %61 = vector.broadcast %58 : vector<1x128xf32> to vector<16x128xf32>
    %62 = arith.mulf %60, %61 : vector<16x128xf32>
    %63 = vector.extract_strided_slice %2 {offsets = [0, 2], sizes = [16, 1], strides = [1, 1]} : vector<16x8xf32> to vector<16x1xf32>
    %64 = vector.broadcast %63 : vector<16x1xf32> to vector<16x128xf32>
    %65 = vector.broadcast %53 : vector<1x128xf32> to vector<16x128xf32>
    %66 = arith.mulf %64, %65 : vector<16x128xf32>
    %67 = arith.addf %45, %62 : vector<16x128xf32>
    %68 = arith.addf %46, %66 : vector<16x128xf32>
    %c48_i32_9 = arith.constant 48 : i32
    %69 = vector.broadcast %c48_i32_9 : i32 to vector<1x128xi32>
    %70 = arith.cmpi sge, %3, %69 : vector<1x128xi32>
    %c64_i32 = arith.constant 64 : i32
    %71 = vector.broadcast %c64_i32 : i32 to vector<1x128xi32>
    %72 = arith.cmpi slt, %3, %71 : vector<1x128xi32>
    %73 = arith.andi %70, %72 : vector<1x128xi1>
    %74 = arith.extui %73 : vector<1x128xi1> to vector<1x128xi32>
    %75 = arith.sitofp %74 : vector<1x128xi32> to vector<1x128xf32>
    %cst_10 = arith.constant 4.700000e+01 : f32
    %76 = vector.broadcast %cst_10 : f32 to vector<1x128xf32>
    %77 = arith.subf %4, %76 : vector<1x128xf32>
    %cst_11 = arith.constant 3.14159274 : f32
    %78 = vector.broadcast %cst_11 : f32 to vector<1x128xf32>
    %79 = arith.mulf %77, %78 : vector<1x128xf32>
    %80 = arith.mulf %75, %79 : vector<1x128xf32>
    %81 = vector.extract_strided_slice %0 {offsets = [0, 3], sizes = [16, 1], strides = [1, 1]} : vector<16x8xf32> to vector<16x1xf32>
    %82 = vector.broadcast %81 : vector<16x1xf32> to vector<16x128xf32>
    %83 = vector.broadcast %80 : vector<1x128xf32> to vector<16x128xf32>
    %84 = arith.mulf %82, %83 : vector<16x128xf32>
    %85 = vector.extract_strided_slice %2 {offsets = [0, 3], sizes = [16, 1], strides = [1, 1]} : vector<16x8xf32> to vector<16x1xf32>
    %86 = vector.broadcast %85 : vector<16x1xf32> to vector<16x128xf32>
    %87 = vector.broadcast %75 : vector<1x128xf32> to vector<16x128xf32>
    %88 = arith.mulf %86, %87 : vector<16x128xf32>
    %89 = arith.addf %67, %84 : vector<16x128xf32>
    %90 = arith.addf %68, %88 : vector<16x128xf32>
    %c64_i32_12 = arith.constant 64 : i32
    %91 = vector.broadcast %c64_i32_12 : i32 to vector<1x128xi32>
    %92 = arith.cmpi sge, %3, %91 : vector<1x128xi32>
    %c80_i32 = arith.constant 80 : i32
    %93 = vector.broadcast %c80_i32 : i32 to vector<1x128xi32>
    %94 = arith.cmpi slt, %3, %93 : vector<1x128xi32>
    %95 = arith.andi %92, %94 : vector<1x128xi1>
    %96 = arith.extui %95 : vector<1x128xi1> to vector<1x128xi32>
    %97 = arith.sitofp %96 : vector<1x128xi32> to vector<1x128xf32>
    %cst_13 = arith.constant 6.300000e+01 : f32
    %98 = vector.broadcast %cst_13 : f32 to vector<1x128xf32>
    %99 = arith.subf %4, %98 : vector<1x128xf32>
    %cst_14 = arith.constant 3.14159274 : f32
    %100 = vector.broadcast %cst_14 : f32 to vector<1x128xf32>
    %101 = arith.mulf %99, %100 : vector<1x128xf32>
    %102 = arith.mulf %97, %101 : vector<1x128xf32>
    %103 = vector.extract_strided_slice %0 {offsets = [0, 4], sizes = [16, 1], strides = [1, 1]} : vector<16x8xf32> to vector<16x1xf32>
    %104 = vector.broadcast %103 : vector<16x1xf32> to vector<16x128xf32>
    %105 = vector.broadcast %102 : vector<1x128xf32> to vector<16x128xf32>
    %106 = arith.mulf %104, %105 : vector<16x128xf32>
    %107 = vector.extract_strided_slice %2 {offsets = [0, 4], sizes = [16, 1], strides = [1, 1]} : vector<16x8xf32> to vector<16x1xf32>
    %108 = vector.broadcast %107 : vector<16x1xf32> to vector<16x128xf32>
    %109 = vector.broadcast %97 : vector<1x128xf32> to vector<16x128xf32>
    %110 = arith.mulf %108, %109 : vector<16x128xf32>
    %111 = arith.addf %89, %106 : vector<16x128xf32>
    %112 = arith.addf %90, %110 : vector<16x128xf32>
    %c80_i32_15 = arith.constant 80 : i32
    %113 = vector.broadcast %c80_i32_15 : i32 to vector<1x128xi32>
    %114 = arith.cmpi sge, %3, %113 : vector<1x128xi32>
    %c96_i32 = arith.constant 96 : i32
    %115 = vector.broadcast %c96_i32 : i32 to vector<1x128xi32>
    %116 = arith.cmpi slt, %3, %115 : vector<1x128xi32>
    %117 = arith.andi %114, %116 : vector<1x128xi1>
    %118 = arith.extui %117 : vector<1x128xi1> to vector<1x128xi32>
    %119 = arith.sitofp %118 : vector<1x128xi32> to vector<1x128xf32>
    %cst_16 = arith.constant 7.900000e+01 : f32
    %120 = vector.broadcast %cst_16 : f32 to vector<1x128xf32>
    %121 = arith.subf %4, %120 : vector<1x128xf32>
    %cst_17 = arith.constant 3.14159274 : f32
    %122 = vector.broadcast %cst_17 : f32 to vector<1x128xf32>
    %123 = arith.mulf %121, %122 : vector<1x128xf32>
    %124 = arith.mulf %119, %123 : vector<1x128xf32>
    %125 = vector.extract_strided_slice %0 {offsets = [0, 5], sizes = [16, 1], strides = [1, 1]} : vector<16x8xf32> to vector<16x1xf32>
    %126 = vector.broadcast %125 : vector<16x1xf32> to vector<16x128xf32>
    %127 = vector.broadcast %124 : vector<1x128xf32> to vector<16x128xf32>
    %128 = arith.mulf %126, %127 : vector<16x128xf32>
    %129 = vector.extract_strided_slice %2 {offsets = [0, 5], sizes = [16, 1], strides = [1, 1]} : vector<16x8xf32> to vector<16x1xf32>
    %130 = vector.broadcast %129 : vector<16x1xf32> to vector<16x128xf32>
    %131 = vector.broadcast %119 : vector<1x128xf32> to vector<16x128xf32>
    %132 = arith.mulf %130, %131 : vector<16x128xf32>
    %133 = arith.addf %111, %128 : vector<16x128xf32>
    %134 = arith.addf %112, %132 : vector<16x128xf32>
    %c96_i32_18 = arith.constant 96 : i32
    %135 = vector.broadcast %c96_i32_18 : i32 to vector<1x128xi32>
    %136 = arith.cmpi sge, %3, %135 : vector<1x128xi32>
    %c112_i32 = arith.constant 112 : i32
    %137 = vector.broadcast %c112_i32 : i32 to vector<1x128xi32>
    %138 = arith.cmpi slt, %3, %137 : vector<1x128xi32>
    %139 = arith.andi %136, %138 : vector<1x128xi1>
    %140 = arith.extui %139 : vector<1x128xi1> to vector<1x128xi32>
    %141 = arith.sitofp %140 : vector<1x128xi32> to vector<1x128xf32>
    %cst_19 = arith.constant 9.500000e+01 : f32
    %142 = vector.broadcast %cst_19 : f32 to vector<1x128xf32>
    %143 = arith.subf %4, %142 : vector<1x128xf32>
    %cst_20 = arith.constant 3.14159274 : f32
    %144 = vector.broadcast %cst_20 : f32 to vector<1x128xf32>
    %145 = arith.mulf %143, %144 : vector<1x128xf32>
    %146 = arith.mulf %141, %145 : vector<1x128xf32>
    %147 = vector.extract_strided_slice %0 {offsets = [0, 6], sizes = [16, 1], strides = [1, 1]} : vector<16x8xf32> to vector<16x1xf32>
    %148 = vector.broadcast %147 : vector<16x1xf32> to vector<16x128xf32>
    %149 = vector.broadcast %146 : vector<1x128xf32> to vector<16x128xf32>
    %150 = arith.mulf %148, %149 : vector<16x128xf32>
    %151 = vector.extract_strided_slice %2 {offsets = [0, 6], sizes = [16, 1], strides = [1, 1]} : vector<16x8xf32> to vector<16x1xf32>
    %152 = vector.broadcast %151 : vector<16x1xf32> to vector<16x128xf32>
    %153 = vector.broadcast %141 : vector<1x128xf32> to vector<16x128xf32>
    %154 = arith.mulf %152, %153 : vector<16x128xf32>
    %155 = arith.addf %133, %150 : vector<16x128xf32>
    %156 = arith.addf %134, %154 : vector<16x128xf32>
    %c112_i32_21 = arith.constant 112 : i32
    %157 = vector.broadcast %c112_i32_21 : i32 to vector<1x128xi32>
    %158 = arith.cmpi sge, %3, %157 : vector<1x128xi32>
    %c128_i32 = arith.constant 128 : i32
    %159 = vector.broadcast %c128_i32 : i32 to vector<1x128xi32>
    %160 = arith.cmpi slt, %3, %159 : vector<1x128xi32>
    %161 = arith.andi %158, %160 : vector<1x128xi1>
    %162 = arith.extui %161 : vector<1x128xi1> to vector<1x128xi32>
    %163 = arith.sitofp %162 : vector<1x128xi32> to vector<1x128xf32>
    %cst_22 = arith.constant 1.110000e+02 : f32
    %164 = vector.broadcast %cst_22 : f32 to vector<1x128xf32>
    %165 = arith.subf %4, %164 : vector<1x128xf32>
    %cst_23 = arith.constant 3.14159274 : f32
    %166 = vector.broadcast %cst_23 : f32 to vector<1x128xf32>
    %167 = arith.mulf %165, %166 : vector<1x128xf32>
    %168 = arith.mulf %163, %167 : vector<1x128xf32>
    %169 = vector.extract_strided_slice %0 {offsets = [0, 7], sizes = [16, 1], strides = [1, 1]} : vector<16x8xf32> to vector<16x1xf32>
    %170 = vector.broadcast %169 : vector<16x1xf32> to vector<16x128xf32>
    %171 = vector.broadcast %168 : vector<1x128xf32> to vector<16x128xf32>
    %172 = arith.mulf %170, %171 : vector<16x128xf32>
    %173 = vector.extract_strided_slice %2 {offsets = [0, 7], sizes = [16, 1], strides = [1, 1]} : vector<16x8xf32> to vector<16x1xf32>
    %174 = vector.broadcast %173 : vector<16x1xf32> to vector<16x128xf32>
    %175 = vector.broadcast %163 : vector<1x128xf32> to vector<16x128xf32>
    %176 = arith.mulf %174, %175 : vector<16x128xf32>
    %177 = arith.addf %155, %172 : vector<16x128xf32>
    %178 = arith.addf %156, %176 : vector<16x128xf32>
    %179 = math.sin %177 : vector<16x128xf32>
    %180 = arith.mulf %179, %178 : vector<16x128xf32>
    %c0_24 = arith.constant 0 : index
    %c0_25 = arith.constant 0 : index
    %181 = vector.load %arg2[%c0_24, %c0_25] : memref<16x128xf32, #tpu.memory_space<vmem>>, vector<16x128xf32>
    tpu.vector_store %arg2[%c0_24, %c0_25], %180 {strides = array<i32>} : memref<16x128xf32, #tpu.memory_space<vmem>>, vector<16x128xf32>,
    return
  }
  func.func @transform_0(%arg0: i32) -> (i32, i32) {
    %c0_i32 = arith.constant 0 : i32
    %c0_i32_0 = arith.constant 0 : i32
    return %arg0, %c0_i32 : i32, i32
  }
  func.func @transform_1(%arg0: i32) -> (i32, i32) {
    %c0_i32 = arith.constant 0 : i32
    %c0_i32_0 = arith.constant 0 : i32
    return %arg0, %c0_i32 : i32, i32
  }
}

</mosaic_0001>

<llo_original>
// kernel: tpu_custom_call.1
$region0: #{tpu_custom_call.1}
  #allocation0 [shape = 'u32[]', space=smem, size = 0x4, offset = 0x4, fixed_abs, tag = 'smem constant byte address 0x4 - core index']
  #allocation1 [shape = 'u32[144,128]{1,0:T(1,128)}', space=vmem, size = 0x12000, scoped, tag = 'internal scratch']
  %s0 = inlined_call_operand.vmem [shape: f32[16,8], index: 0, kind: input, shape index: {}]
  %s1 = inlined_call_operand.hbm [shape: f32[16,128], index: 1, kind: output, shape index: {}]
  %s2 = sld [smem:[#allocation0]]
  $region14: #{tpu_custom_call.1} parent=0
    _
  %s4 = ssub.s32 1, %s2
  %s5 = scalar_select 0, %s4, %s2
  $region1: #{tpu_custom_call.1} parent=0
    #allocation2 [shape = 'u8[8192]{0}', space=vmem, size = 0x2000, scoped, tag = 'output window, operand 0, single buffered']
    #allocation3 [shape = 's32[1]{0}', space=sflag, size = 0x4, scoped, tag = 'scoped memory for tpu_custom_call.1']
    %6 = vsyncpa [#allocation3], 0
    // Predicated region
    $region2: #{tpu_custom_call.1} parent=1 // pred_check
      _
    $region3: #{tpu_custom_call.1} parent=1 // pred_check_branch
      %8 = sbr.rel (0) target = $region5
    $region4: #{tpu_custom_call.1} parent=1 // pred_region
      _
    $region5: #{tpu_custom_call.1} parent=1 // pred_fallthru
      _
    %v9 = vld [vmem:[%s0] sm:$0xff]
    %v10 = vld [vmem:[%s0 + $0x8] sm:$0xff]
    %v11 = vrcp.pop %v9
    %v12 = vmul.f32 1.0, %v11
    %v13 = vrcp.pop %v10
    %v14 = vmul.f32 1.0, %v13
    %v15 = vlaneseq
    %v16 = vand.u32 %v15, 127
    %v17 = vcvt.s32.f32 %v16
    %vm18 = vcmp.ge.s32.totalorder %v16, 0
    %vm19 = vcmp.lt.s32.totalorder %v16, 16
    %vm20 = vmand %vm18, %vm19
    %v21 = vsel %vm20, 1, 0
    %v22 = vcvt.s32.f32 %v21
    %v23 = vsub.f32 %v17, -1.0
    %v24 = vmul.f32 %v23, 3.1415927
    %v25 = vmul.f32 %v22, %v24
    %27 = vset.pattern.permute.xlu0 0
    %28 = vperm.xlu0 %27, %v9
    %v29 = vpop.permute.xlu0 %28
    %32 = vset.pattern.permute.xlu0 0
    %33 = vperm.xlu0 %32, %v10
    %v34 = vpop.permute.xlu0 %33
    %v36 = vmul.f32 %v29, %v25
    %v37 = vmul.f32 %v34, %v25
    %39 = vset.pattern.permute.xlu0 0
    %40 = vperm.xlu0 %39, %v12
    %v41 = vpop.permute.xlu0 %40
    %44 = vset.pattern.permute.xlu0 0
    %45 = vperm.xlu0 %44, %v14
    %v46 = vpop.permute.xlu0 %45
    %v48 = vmul.f32 %v41, %v22
    %v49 = vmul.f32 %v46, %v22
    %vm50 = vcmp.ge.s32.totalorder %v16, 16
    %vm51 = vcmp.lt.s32.totalorder %v16, 32
    %vm52 = vmand %vm50, %vm51
    %v53 = vsel %vm52, 1, 0
    %v54 = vcvt.s32.f32 %v53
    %v55 = vsub.f32 %v17, 15.0
    %v56 = vmul.f32 %v55, 3.1415927
    %v57 = vmul.f32 %v54, %v56
    %58 = vset.pattern.permute.xlu0 1
    %59 = vperm.xlu0 %58, %v9
    %v60 = vpop.permute.xlu0 %59
    %62 = vset.pattern.permute.xlu0 1
    %63 = vperm.xlu0 %62, %v10
    %v64 = vpop.permute.xlu0 %63
    %v66 = vmul.f32 %v60, %v57
    %v67 = vmul.f32 %v64, %v57
    %68 = vset.pattern.permute.xlu0 1
    %69 = vperm.xlu0 %68, %v12
    %v70 = vpop.permute.xlu0 %69
    %72 = vset.pattern.permute.xlu0 1
    %73 = vperm.xlu0 %72, %v14
    %v74 = vpop.permute.xlu0 %73
    %v76 = vmul.f32 %v70, %v54
    %v77 = vmul.f32 %v74, %v54
    %v78 = vadd.f32 %v36, %v66
    %v79 = vadd.f32 %v37, %v67
    %v80 = vadd.f32 %v48, %v76
    %v81 = vadd.f32 %v49, %v77
    %vm82 = vcmp.ge.s32.totalorder %v16, 32
    %vm83 = vcmp.lt.s32.totalorder %v16, 48
    %vm84 = vmand %vm82, %vm83
    %v85 = vsel %vm84, 1, 0
    %v86 = vcvt.s32.f32 %v85
    %v87 = vsub.f32 %v17, 31.0
    %v88 = vmul.f32 %v87, 3.1415927
    %v89 = vmul.f32 %v86, %v88
    %90 = vset.pattern.permute.xlu0 2
    %91 = vperm.xlu0 %90, %v9
    %v92 = vpop.permute.xlu0 %91
    %94 = vset.pattern.permute.xlu0 2
    %95 = vperm.xlu0 %94, %v10
    %v96 = vpop.permute.xlu0 %95
    %v98 = vmul.f32 %v92, %v89
    %v99 = vmul.f32 %v96, %v89
    %100 = vset.pattern.permute.xlu0 2
    %101 = vperm.xlu0 %100, %v12
    %v102 = vpop.permute.xlu0 %101
    %104 = vset.pattern.permute.xlu0 2
    %105 = vperm.xlu0 %104, %v14
    %v106 = vpop.permute.xlu0 %105
    %v108 = vmul.f32 %v102, %v86
    %v109 = vmul.f32 %v106, %v86
    %v110 = vadd.f32 %v78, %v98
    %v111 = vadd.f32 %v79, %v99
    %v112 = vadd.f32 %v80, %v108
    %v113 = vadd.f32 %v81, %v109
    %vm114 = vcmp.ge.s32.totalorder %v16, 48
    %vm115 = vcmp.lt.s32.totalorder %v16, 64
    %vm116 = vmand %vm114, %vm115
    %v117 = vsel %vm116, 1, 0
    %v118 = vcvt.s32.f32 %v117
    %v119 = vsub.f32 %v17, 47.0
    %v120 = vmul.f32 %v119, 3.1415927
    %v121 = vmul.f32 %v118, %v120
    %122 = vset.pattern.permute.xlu0 3
    %123 = vperm.xlu0 %122, %v9
    %v124 = vpop.permute.xlu0 %123
    %126 = vset.pattern.permute.xlu0 3
    %127 = vperm.xlu0 %126, %v10
    %v128 = vpop.permute.xlu0 %127
    %v130 = vmul.f32 %v124, %v121
    %v131 = vmul.f32 %v128, %v121
    %132 = vset.pattern.permute.xlu0 3
    %133 = vperm.xlu0 %132, %v12
    %v134 = vpop.permute.xlu0 %133
    %136 = vset.pattern.permute.xlu0 3
    %137 = vperm.xlu0 %136, %v14
    %v138 = vpop.permute.xlu0 %137
    %v140 = vmul.f32 %v134, %v118
    %v141 = vmul.f32 %v138, %v118
    %v142 = vadd.f32 %v110, %v130
    %v143 = vadd.f32 %v111, %v131
    %v144 = vadd.f32 %v112, %v140
    %v145 = vadd.f32 %v113, %v141
    %vm146 = vcmp.ge.s32.totalorder %v16, 64
    %vm147 = vcmp.lt.s32.totalorder %v16, 80
    %vm148 = vmand %vm146, %vm147
    %v149 = vsel %vm148, 1, 0
    %v150 = vcvt.s32.f32 %v149
    %v151 = vsub.f32 %v17, 63.0
    %v152 = vmul.f32 %v151, 3.1415927
    %v153 = vmul.f32 %v150, %v152
    %154 = vset.pattern.permute.xlu0 4
    %155 = vperm.xlu0 %154, %v9
    %v156 = vpop.permute.xlu0 %155
    %158 = vset.pattern.permute.xlu0 4
    %159 = vperm.xlu0 %158, %v10
    %v160 = vpop.permute.xlu0 %159
    %v162 = vmul.f32 %v156, %v153
    %v163 = vmul.f32 %v160, %v153
    %164 = vset.pattern.permute.xlu0 4
    %165 = vperm.xlu0 %164, %v12
    %v166 = vpop.permute.xlu0 %165
    %168 = vset.pattern.permute.xlu0 4
    %169 = vperm.xlu0 %168, %v14
    %v170 = vpop.permute.xlu0 %169
    %v172 = vmul.f32 %v166, %v150
    %v173 = vmul.f32 %v170, %v150
    %v174 = vadd.f32 %v142, %v162
    %v175 = vadd.f32 %v143, %v163
    %v176 = vadd.f32 %v144, %v172
    %v177 = vadd.f32 %v145, %v173
    %vm178 = vcmp.ge.s32.totalorder %v16, 80
    %vm179 = vcmp.lt.s32.totalorder %v16, 96
    %vm180 = vmand %vm178, %vm179
    %v181 = vsel %vm180, 1, 0
    %v182 = vcvt.s32.f32 %v181
    %v183 = vsub.f32 %v17, 79.0
    %v184 = vmul.f32 %v183, 3.1415927
    %v185 = vmul.f32 %v182, %v184
    %186 = vset.pattern.permute.xlu0 5
    %187 = vperm.xlu0 %186, %v9
    %v188 = vpop.permute.xlu0 %187
    %190 = vset.pattern.permute.xlu0 5
    %191 = vperm.xlu0 %190, %v10
    %v192 = vpop.permute.xlu0 %191
    %v194 = vmul.f32 %v188, %v185
    %v195 = vmul.f32 %v192, %v185
    %196 = vset.pattern.permute.xlu0 5
    %197 = vperm.xlu0 %196, %v12
    %v198 = vpop.permute.xlu0 %197
    %200 = vset.pattern.permute.xlu0 5
    %201 = vperm.xlu0 %200, %v14
    %v202 = vpop.permute.xlu0 %201
    %v204 = vmul.f32 %v198, %v182
    %v205 = vmul.f32 %v202, %v182
    %v206 = vadd.f32 %v174, %v194
    %v207 = vadd.f32 %v175, %v195
    %v208 = vadd.f32 %v176, %v204
    %v209 = vadd.f32 %v177, %v205
    %vm210 = vcmp.ge.s32.totalorder %v16, 96
    %vm211 = vcmp.lt.s32.totalorder %v16, 112
    %vm212 = vmand %vm210, %vm211
    %v213 = vsel %vm212, 1, 0
    %v214 = vcvt.s32.f32 %v213
    %v215 = vsub.f32 %v17, 95.0
    %v216 = vmul.f32 %v215, 3.1415927
    %v217 = vmul.f32 %v214, %v216
    %218 = vset.pattern.permute.xlu0 6
    %219 = vperm.xlu0 %218, %v9
    %v220 = vpop.permute.xlu0 %219
    %222 = vset.pattern.permute.xlu0 6
    %223 = vperm.xlu0 %222, %v10
    %v224 = vpop.permute.xlu0 %223
    %v226 = vmul.f32 %v220, %v217
    %v227 = vmul.f32 %v224, %v217
    %228 = vset.pattern.permute.xlu0 6
    %229 = vperm.xlu0 %228, %v12
    %v230 = vpop.permute.xlu0 %229
    %232 = vset.pattern.permute.xlu0 6
    %233 = vperm.xlu0 %232, %v14
    %v234 = vpop.permute.xlu0 %233
    %v236 = vmul.f32 %v230, %v214
    %v237 = vmul.f32 %v234, %v214
    %v238 = vadd.f32 %v206, %v226
    %v239 = vadd.f32 %v207, %v227
    %v240 = vadd.f32 %v208, %v236
    %v241 = vadd.f32 %v209, %v237
    %vm242 = vcmp.ge.s32.totalorder %v16, 112
    %vm243 = vcmp.lt.s32.totalorder %v16, 128
    %vm244 = vmand %vm242, %vm243
    %v245 = vsel %vm244, 1, 0
    %v246 = vcvt.s32.f32 %v245
    %v247 = vsub.f32 %v17, 111.0
    %v248 = vmul.f32 %v247, 3.1415927
    %v249 = vmul.f32 %v246, %v248
    %250 = vset.pattern.permute.xlu0 7
    %251 = vperm.xlu0 %250, %v9
    %v252 = vpop.permute.xlu0 %251
    %254 = vset.pattern.permute.xlu0 7
    %255 = vperm.xlu0 %254, %v10
    %v256 = vpop.permute.xlu0 %255
    %v258 = vmul.f32 %v252, %v249
    %v259 = vmul.f32 %v256, %v249
    %260 = vset.pattern.permute.xlu0 7
    %261 = vperm.xlu0 %260, %v12
    %v262 = vpop.permute.xlu0 %261
    %264 = vset.pattern.permute.xlu0 7
    %265 = vperm.xlu0 %264, %v14
    %v266 = vpop.permute.xlu0 %265
    %v268 = vmul.f32 %v262, %v246
    %v269 = vmul.f32 %v266, %v246
    %v270 = vadd.f32 %v238, %v258
    %v271 = vadd.f32 %v239, %v259
    %v272 = vadd.f32 %v240, %v268
    %v273 = vadd.f32 %v241, %v269
    %v274 = vand.u32 2147483647, %v270
    %vm275 = vcmp.le.f32.partialorder %v274, 0.7853982
    %vm276 = vcmp.lt.s32.totalorder %v270, 0
    %v277 = vand.u32 %v270, 2139095040
    %v278 = vshrl.u32 %v277, 23
    %v279 = vsub.s32 %v278, 127
    %v280 = vand.u32 2147483647, %v270
    %v281 = vand.u32 %v280, 8388607
    %v282 = vor.u32 %v281, 8388608
    %v283 = vsub.s32 0, %v282
    %v284 = vadd.s32 %v279, 1
    %vm285 = vcmp.gt.s32.totalorder %v284, 0
    %v286 = vsel %vm285, %v284, 0
    %v287 = vshrl.u32 %v286, 5
    %v288 = vand.u32 %v286, 31
    %v289 = vsub.s32 32, %v288
    %v290 = vshrl.u32 683565275, %v289
    %v291 = vshll.u32 683565275, %v288
    %v292 = vshrl.u32 2475754826, %v289
    %v293 = vor.u32 %v291, %v292
    %v294 = vshll.u32 2475754826, %v288
    %v295 = vshrl.u32 2131351028, %v289
    %v296 = vor.u32 %v294, %v295
    %v297 = vshll.u32 2131351028, %v288
    %v298 = vshrl.u32 2102212464, %v289
    %v299 = vor.u32 %v297, %v298
    %v300 = vshll.u32 2102212464, %v288
    %v301 = vshrl.u32 920167782, %v289
    %v302 = vor.u32 %v300, %v301
    %v303 = vshll.u32 920167782, %v288
    %v304 = vshrl.u32 1326507024, %v289
    %v305 = vor.u32 %v303, %v304
    %vm306 = vcmp.lt.s32.totalorder %v287, 1
    %vm307 = vcmp.lt.s32.totalorder %v287, 2
    %vm308 = vcmp.lt.s32.totalorder %v287, 3
    %vm309 = vcmp.lt.s32.totalorder %v287, 4
    %v310 = vsel %vm306, %v290, %v293
    %v311 = vsel %vm309, %v299, 2102212464
    %v312 = vsel %vm308, %v296, %v311
    %v313 = vsel %vm307, %v310, %v312
    %v314 = vsel %vm306, %v293, %v296
    %v315 = vsel %vm309, %v302, 920167782
    %v316 = vsel %vm308, %v299, %v315
    %v317 = vsel %vm307, %v314, %v316
    %v318 = vsel %vm306, %v296, %v299
    %v319 = vsel %vm309, %v305, 1326507024
    %v320 = vsel %vm308, %v302, %v319
    %v321 = vsel %vm307, %v318, %v320
    %v322 = vshll.u32 %v282, 8
    %v323 = vmul.u32.u64.compose %v322, %v321
    %v324 = vextract.low.u32 %v323
    %v325 = vextract.high.u32 %v323
    %v326 = vmul.u32.u64.compose %v322, %v317
    %v327 = vextract.low.u32 %v326
    %v328 = vextract.high.u32 %v326
    %v329 = vmul.u32 %v322, %v313
    %v330 = vadd.s32 %v325, %v327
    %vm331 = vc.u32 %v325, %v327
    %v332 = vadd.s32 %v328, 1
    %v333 = vsel %vm331, %v332, %v328
    %v334 = vadd.s32 %v329, %v333
    %v335 = vadd.s32 %v334, 536870912
    %v336 = vshrl.u32 %v335, 30
    %v337 = vshll.u32 %v336, 30
    %v338 = vsub.s32 %v334, %v337
    %vm339 = vcmp.lt.s32.totalorder %v338, 0
    %v340 = vsub.s32 0, %v338
    %v341 = vsel %vm339, %v340, %v338
    %v342 = vclz %v341
    %v343 = vsub.s32 %v342, 2
    %vm344 = vcmp.gt.s32.totalorder 0, %v343
    %v345 = vsel %vm344, 0, %v343
    %v346 = vsub.s32 32, %v345
    %v347 = vshll.u32 %v338, %v345
    %v348 = vshrl.u32 %v330, %v346
    %v349 = vor.u32 %v347, %v348
    %v350 = vsub.s32 4294967266, %v345
    %v351 = vadd.s32 %v350, 127
    %v352 = vshll.u32 %v351, 23
    %v353 = vor.u32 4788187, %v352
    %v354 = vand.u32 2147483647, %v353
    %v356 = vcvt.s32.f32 %v349
    %v357 = vmul.f32 %v356, %v354
    %v358 = vxor.u32 %v357, 2147483648
    %v359 = vsel %vm276, %v358, %v357
    %v360 = vsub.s32 4, %v336
    %v361 = vsel %vm276, %v360, %v336
    %v362 = vsel %vm275, %v270, %v359
    %v363 = vsel %vm275, 0, %v361
    %v364 = vcosq.f32.pop %v362
    %v365 = vsinq.f32.pop %v362
    %vm366 = vweird.f32 %v270
    %v367 = vadd.s32 %v363, 3
    %v368 = vand.u32 %v367, 3
    %vm369 = vcmp.lt.s32.totalorder %v368, 2
    %vm370 = vcmp.eq.s32.totalorder %v368, 0
    %v371 = vxor.u32 %v365, 2147483648
    %v372 = vsel %vm370, %v364, %v371
    %vm373 = vcmp.eq.s32.totalorder %v368, 2
    %v374 = vxor.u32 %v364, 2147483648
    %v375 = vsel %vm373, %v374, %v365
    %v376 = vsel %vm369, %v372, %v375
    %v377 = vsel %vm366, nan, %v376
    %v378 = vand.u32 2147483647, %v271
    %vm379 = vcmp.le.f32.partialorder %v378, 0.7853982
    %vm380 = vcmp.lt.s32.totalorder %v271, 0
    %v381 = vand.u32 %v271, 2139095040
    %v382 = vshrl.u32 %v381, 23
    %v383 = vsub.s32 %v382, 127
    %v384 = vand.u32 2147483647, %v271
    %v385 = vand.u32 %v384, 8388607
    %v386 = vor.u32 %v385, 8388608
    %v387 = vsub.s32 0, %v386
    %v388 = vadd.s32 %v383, 1
    %vm389 = vcmp.gt.s32.totalorder %v388, 0
    %v390 = vsel %vm389, %v388, 0
    %v391 = vshrl.u32 %v390, 5
    %v392 = vand.u32 %v390, 31
    %v393 = vsub.s32 32, %v392
    %v394 = vshrl.u32 683565275, %v393
    %v395 = vshll.u32 683565275, %v392
    %v396 = vshrl.u32 2475754826, %v393
    %v397 = vor.u32 %v395, %v396
    %v398 = vshll.u32 2475754826, %v392
    %v399 = vshrl.u32 2131351028, %v393
    %v400 = vor.u32 %v398, %v399
    %v401 = vshll.u32 2131351028, %v392
    %v402 = vshrl.u32 2102212464, %v393
    %v403 = vor.u32 %v401, %v402
    %v404 = vshll.u32 2102212464, %v392
    %v405 = vshrl.u32 920167782, %v393
    %v406 = vor.u32 %v404, %v405
    %v407 = vshll.u32 920167782, %v392
    %v408 = vshrl.u32 1326507024, %v393
    %v409 = vor.u32 %v407, %v408
    %vm410 = vcmp.lt.s32.totalorder %v391, 1
    %vm411 = vcmp.lt.s32.totalorder %v391, 2
    %vm412 = vcmp.lt.s32.totalorder %v391, 3
    %vm413 = vcmp.lt.s32.totalorder %v391, 4
    %v414 = vsel %vm410, %v394, %v397
    %v415 = vsel %vm413, %v403, 2102212464
    %v416 = vsel %vm412, %v400, %v415
    %v417 = vsel %vm411, %v414, %v416
    %v418 = vsel %vm410, %v397, %v400
    %v419 = vsel %vm413, %v406, 920167782
    %v420 = vsel %vm412, %v403, %v419
    %v421 = vsel %vm411, %v418, %v420
    %v422 = vsel %vm410, %v400, %v403
    %v423 = vsel %vm413, %v409, 1326507024
    %v424 = vsel %vm412, %v406, %v423
    %v425 = vsel %vm411, %v422, %v424
    %v426 = vshll.u32 %v386, 8
    %v427 = vmul.u32.u64.compose %v426, %v425
    %v428 = vextract.low.u32 %v427
    %v429 = vextract.high.u32 %v427
    %v430 = vmul.u32.u64.compose %v426, %v421
    %v431 = vextract.low.u32 %v430
    %v432 = vextract.high.u32 %v430
    %v433 = vmul.u32 %v426, %v417
    %v434 = vadd.s32 %v429, %v431
    %vm435 = vc.u32 %v429, %v431
    %v436 = vadd.s32 %v432, 1
    %v437 = vsel %vm435, %v436, %v432
    %v438 = vadd.s32 %v433, %v437
    %v439 = vadd.s32 %v438, 536870912
    %v440 = vshrl.u32 %v439, 30
    %v441 = vshll.u32 %v440, 30
    %v442 = vsub.s32 %v438, %v441
    %vm443 = vcmp.lt.s32.totalorder %v442, 0
    %v444 = vsub.s32 0, %v442
    %v445 = vsel %vm443, %v444, %v442
    %v446 = vclz %v445
    %v447 = vsub.s32 %v446, 2
    %vm448 = vcmp.gt.s32.totalorder 0, %v447
    %v449 = vsel %vm448, 0, %v447
    %v450 = vsub.s32 32, %v449
    %v451 = vshll.u32 %v442, %v449
    %v452 = vshrl.u32 %v434, %v450
    %v453 = vor.u32 %v451, %v452
    %v454 = vsub.s32 4294967266, %v449
    %v455 = vadd.s32 %v454, 127
    %v456 = vshll.u32 %v455, 23
    %v457 = vor.u32 4788187, %v456
    %v458 = vand.u32 2147483647, %v457
    %v460 = vcvt.s32.f32 %v453
    %v461 = vmul.f32 %v460, %v458
    %v462 = vxor.u32 %v461, 2147483648
    %v463 = vsel %vm380, %v462, %v461
    %v464 = vsub.s32 4, %v440
    %v465 = vsel %vm380, %v464, %v440
    %v466 = vsel %vm379, %v271, %v463
    %v467 = vsel %vm379, 0, %v465
    %v468 = vcosq.f32.pop %v466
    %v469 = vsinq.f32.pop %v466
    %vm470 = vweird.f32 %v271
    %v471 = vadd.s32 %v467, 3
    %v472 = vand.u32 %v471, 3
    %vm473 = vcmp.lt.s32.totalorder %v472, 2
    %vm474 = vcmp.eq.s32.totalorder %v472, 0
    %v475 = vxor.u32 %v469, 2147483648
    %v476 = vsel %vm474, %v468, %v475
    %vm477 = vcmp.eq.s32.totalorder %v472, 2
    %v478 = vxor.u32 %v468, 2147483648
    %v479 = vsel %vm477, %v478, %v469
    %v480 = vsel %vm473, %v476, %v479
    %v481 = vsel %vm470, nan, %v480
    %v482 = vmul.f32 %v377, %v272
    %v483 = vmul.f32 %v481, %v273
    %484 = vst [vmem:[#allocation2] sm:$0xff] %v482
    %485 = vst [vmem:[#allocation2 + $0x8] sm:$0xff] %v483
    // Predicated region
    $region6: #{tpu_custom_call.1} parent=1 // pred_check
      _
    $region7: #{tpu_custom_call.1} parent=1 // pred_check_branch
      %487 = sbr.rel (0) target = $region9
    $region8: #{tpu_custom_call.1} parent=1 // pred_region
      %s489 = ssub.s32 256, 256
      %490 = vsyncadd [#allocation3], %s489
      %s491 = sshll.u32 [#allocation2], 4
      %s492 = int_to_ptr.vmem [resolvable:$true] %s491
      %497 = dma.vmem_to_hbm [thread:$0]  %s492, 256, %s1, [#allocation3], 128, 128, 8
    $region9: #{tpu_custom_call.1} parent=1 // pred_fallthru
      _
    // Predicated region
    $region10: #{tpu_custom_call.1} parent=1 // pred_check
      _
    $region11: #{tpu_custom_call.1} parent=1 // pred_check_branch
      %499 = sbr.rel (0) target = $region13
    $region12: #{tpu_custom_call.1} parent=1 // pred_region
      %500 = dma.done [#allocation3], 256
    $region13: #{tpu_custom_call.1} parent=1 // pred_fallthru
      _
    %501 = vsyncpa [#allocation3], 1

</llo_original>
